<compile_context>
chip_gen: v5e
topology: v5e:2x2
jax: 0.10.0
libtpu: 0.0.40
codegen_flags: <defaults>
</compile_context>

<pallas_src>
import functools

import jax
import jax.numpy as jnp
from jax import lax
from jax.experimental import pallas as pl
from jax.experimental.pallas import tpu as pltpu


def residual_block_kernel(x_ref, w_ref, b_ref, o_ref, *,
                          tile_n, full_n, matmul_dtype, feat_axis):
    """One (batch-tile, out-feature-tile): o = relu(x @ W.T + b) + x[:, cols]."""
    x = x_ref[...]                                   # (TB, F_in) f32 activations
    w = w_ref[...]                                   # (tile_n, F_in), already matmul dtype

    # MXU matmul with f32 accumulation; contract x axis 1 vs W axis 1 (x @ W.T)
    # so the weight stays in PyTorch (out, in) layout -- no per-call transpose.
    y = lax.dot_general(
        x.astype(matmul_dtype), w.astype(matmul_dtype),   # no-ops if already cast
        dimension_numbers=(((1,), (1,)), ((), ())),
        preferred_element_type=jnp.float32,
    )                                                # (TB, tile_n) f32

    y = y + b_ref[...].astype(jnp.float32)           # bias row broadcast (VPU)
    y = jnp.maximum(y, 0.0)                          # ReLU (VPU)

    # Residual add in f32.  If this tile covers all output features, reuse the
    # x already loaded for the matmul (saves a redundant full-tile vld).
    if tile_n == full_n:
        x_res = x
    else:
        j = pl.program_id(feat_axis)
        col0 = pl.multiple_of(j * tile_n, tile_n)
        x_res = x_ref[:, pl.ds(col0, tile_n)]
    o_ref[...] = (y + x_res.astype(jnp.float32)).astype(o_ref.dtype)


def prepare_weight(weight, matmul_dtype=jnp.bfloat16):
    """One-time parameter prep: store the nn.Linear weight in the MXU dtype so
    the kernel's weight DMA moves half the bytes (kernel is HBM-bound)."""
    return weight.astype(matmul_dtype)


def residual_block(x, weight, bias, *, tile_b=256, tile_n=None,
                   matmul_dtype=jnp.bfloat16, out_dtype=None):
    """x: (B, F) f32; weight: (F_out, F_in) PyTorch layout; bias: (F_out,)."""
    B, F = x.shape
    F_out, F_in = weight.shape
    assert F_in == F and F_out == F, "residual add requires in_features == out_features"

    # Ship the weight already in the matmul dtype (ideally done once at parameter
    # load via prepare_weight); this is the bf16-in-HBM byte-reduction lever.
    if weight.dtype != jnp.dtype(matmul_dtype):
        weight = weight.astype(matmul_dtype)

    out_dtype = x.dtype if out_dtype is None else out_dtype

    # ---- batch tiling (pad ragged B up to a tile multiple, slice at the end) ----
    # Default keeps >=2 parallel grid steps for v7x's two TensorCores; on
    # single-TC v5e/v6e pass tile_b >= B to amortize the ~0.35 us/step overhead.
    tile_b = min(tile_b, pl.cdiv(B, 8) * 8)
    B_pad = pl.cdiv(B, tile_b) * tile_b
    if B_pad != B:
        x = jnp.pad(x, ((0, B_pad - B), (0, 0)))

    x_item = jnp.dtype(x.dtype).itemsize
    w_item = jnp.dtype(weight.dtype).itemsize
    b_item = jnp.dtype(bias.dtype).itemsize
    o_item = jnp.dtype(out_dtype).itemsize

    # ---- out-feature tiling: keep the double-buffered weight tile under a VMEM
    # budget; tile_n must be a multiple of 128 (lane-dense, unmasked stores) ----
    if tile_n is None:
        weight_budget = 12 << 20                      # bytes, double-buffered W tile
        tile_n = F_out
        if F_out % 128 == 0 and 2 * F_out * F_in * w_item > weight_budget:
            tile_n = 128                              # smallest lane-dense fallback
            for cand in range(F_out - 128, 127, -128):
                if F_out % cand == 0 and 2 * cand * F_in * w_item <= weight_budget:
                    tile_n = cand
                    break
    assert F_out % tile_n == 0
    assert tile_n == F_out or tile_n % 128 == 0, "tile_n must be a multiple of 128"

    nb = B_pad // tile_b
    nj = F_out // tile_n

    # ---- grid-axis order: keep the operand with more total bytes resident so it
    # is not re-fetched once per sweep of the other axis ----
    weight_bytes = F_out * F_in * w_item
    x_bytes = B_pad * F_in * x_item
    weight_resident = (nj > 1) and (weight_bytes > x_bytes)

    if weight_resident:
        # Feature axis outermost: weight tile fetched once; x streams.
        grid = (nj, nb)
        feat_axis = 0
        x_spec = pl.BlockSpec((tile_b, F_in), lambda j, i: (i, 0))
        w_spec = pl.BlockSpec((tile_n, F_in), lambda j, i: (j, 0))
        b_spec = pl.BlockSpec((1, tile_n), lambda j, i: (0, j))
        o_spec = pl.BlockSpec((tile_b, tile_n), lambda j, i: (i, j))
        x_fetches, w_fetches = nj, 1
    else:
        # Batch axis outermost: x tile fetched once per batch tile; weight streams.
        grid = (nb, nj)
        feat_axis = 1
        x_spec = pl.BlockSpec((tile_b, F_in), lambda i, j: (i, 0))
        w_spec = pl.BlockSpec((tile_n, F_in), lambda i, j: (j, 0))
        b_spec = pl.BlockSpec((1, tile_n), lambda i, j: (0, j))
        o_spec = pl.BlockSpec((tile_b, tile_n), lambda i, j: (i, j))
        x_fetches, w_fetches = 1, (nb if nj > 1 else 1)

    # ---- VMEM budget: never request the full physical VMEM (v7x is 64 MiB) ----
    tile_bytes = (tile_b * F_in * x_item              # x tile
                  + tile_n * F_in * w_item            # weight tile
                  + tile_n * b_item                   # bias tile
                  + tile_b * tile_n * o_item)         # out tile
    try:
        vmem_cap = pltpu.get_tpu_info().vmem_capacity_bytes
    except Exception:                                 # pragma: no cover
        vmem_cap = 64 << 20                           # assume the tightest (v7x)
    vmem_ceiling = (3 * vmem_cap) // 4                # leave compiler headroom
    vmem_limit = int(min(max(2 * tile_bytes + (2 << 20), 32 << 20), vmem_ceiling))

    # ---- cost hint reflecting the actual per-operand re-fetch counts ----
    cost = pl.CostEstimate(
        flops=2 * B_pad * F_in * F_out,
        transcendentals=0,
        bytes_accessed=(x_fetches * B_pad * F_in * x_item
                        + w_fetches * F_out * F_in * w_item
                        + F_out * b_item
                        + B_pad * F_out * o_item),
    )

    kernel = functools.partial(residual_block_kernel, tile_n=tile_n, full_n=F_out,
                               matmul_dtype=matmul_dtype, feat_axis=feat_axis)

    out = pl.pallas_call(
        kernel,
        out_shape=jax.ShapeDtypeStruct((B_pad, F_out), out_dtype),
        grid_spec=pltpu.PrefetchScalarGridSpec(
            num_scalar_prefetch=0,
            grid=grid,
            in_specs=[x_spec, w_spec, b_spec],
            out_specs=o_spec,
        ),
        compiler_params=pltpu.CompilerParams(
            dimension_semantics=("parallel", "parallel"),
            vmem_limit_bytes=vmem_limit,
        ),
        cost_estimate=cost,
    )(x, weight, bias.reshape(1, F_out))

    return out[:B] if B_pad != B else out


def residual_block_ref(x, weight, bias, matmul_dtype=jnp.bfloat16):
    """Pure-JAX reference matching torch semantics (with matching matmul dtype)."""
    y = jnp.dot(x.astype(matmul_dtype), weight.astype(matmul_dtype).T,
                preferred_element_type=jnp.float32)
    return jnp.maximum(y + bias, 0.0) + x


if __name__ == "__main__":
    key = jax.random.PRNGKey(0)
    B, F = 512, 256  # in_features == out_features; 2 batch tiles keep both v7x TCs busy

    kx, kw, kb = jax.random.split(key, 3)
    x = jax.random.normal(kx, (B, F), dtype=jnp.float32)
    # Deterministic synthetic parameters (shapes from nn.Linear(F, F, bias=True)).
    weight_f32 = jax.random.normal(kw, (F, F), dtype=jnp.float32) * (1.0 / jnp.sqrt(F))
    bias = jax.random.normal(kb, (F,), dtype=jnp.float32) * 0.1

    # One-time parameter prep: bf16 weight in HBM halves weight DMA bytes.
    weight = prepare_weight(weight_f32, jnp.bfloat16)

    out = residual_block(x, weight, bias)
    out = jax.block_until_ready(out)

    # Check against a reference using the same bf16-matmul / f32-accumulate recipe.
    ref_bf16 = residual_block_ref(x, weight_f32, bias, matmul_dtype=jnp.bfloat16)
    assert jnp.allclose(out, ref_bf16, atol=1e-2, rtol=1e-2), "mismatch vs bf16 reference"

    # Sanity-check against the full-f32 reference with a bf16-appropriate tolerance.
    ref_f32 = residual_block_ref(x, weight_f32, bias, matmul_dtype=jnp.float32)
    assert jnp.allclose(out, ref_f32, atol=7e-2, rtol=7e-2), "mismatch vs f32 reference"

    print("KERNEL_OK")
</pallas_src>

<mosaic_0001>
module attributes {stable_mosaic.version = 11 : i64} {
  func.func @residual_block_kernel(%arg0: i32, %arg1: i32, %arg2: memref<256x256xf32, #tpu.memory_space<vmem>>, %arg3: memref<256x256xbf16, #tpu.memory_space<vmem>>, %arg4: memref<1x256xf32, #tpu.memory_space<vmem>>, %arg5: memref<256x256xf32, #tpu.memory_space<vmem>>) attributes {dimension_semantics = [#tpu.dimension_semantics<parallel>, #tpu.dimension_semantics<parallel>], iteration_bounds = array<i64: 2, 1>, scalar_prefetch = 0 : i64, scratch_operands = 0 : i64, tpu.core_type = #tpu.core_type<tc>, window_params = [{transform_indices = @transform_0, window_bounds = array<i64: 256, 256>}, {transform_indices = @transform_1, window_bounds = array<i64: 256, 256>}, {transform_indices = @transform_2, window_bounds = array<i64: 1, 256>}, {transform_indices = @transform_3, window_bounds = array<i64: 256, 256>}]} {
    %c0 = arith.constant 0 : index
    %c0_0 = arith.constant 0 : index
    %0 = vector.load %arg2[%c0, %c0_0] : memref<256x256xf32, #tpu.memory_space<vmem>>, vector<256x256xf32>
    %c0_1 = arith.constant 0 : index
    %c0_2 = arith.constant 0 : index
    %1 = vector.load %arg3[%c0_1, %c0_2] : memref<256x256xbf16, #tpu.memory_space<vmem>>, vector<256x256xbf16>
    %2 = arith.truncf %0 : vector<256x256xf32> to vector<256x256xbf16>
    %cst = arith.constant dense<0.000000e+00> : vector<256x256xf32>
    %3 = tpu.matmul %2, %1, %cst {dimension_numbers = #tpu.dot_dimension_numbers<[1], [1], [0], [0], [0, 0, 1, 0], [], []>} : vector<256x256xbf16>, vector<256x256xbf16>, vector<256x256xf32> -> vector<256x256xf32>
    %c0_3 = arith.constant 0 : index
    %c0_4 = arith.constant 0 : index
    %4 = vector.load %arg4[%c0_3, %c0_4] : memref<1x256xf32, #tpu.memory_space<vmem>>, vector<1x256xf32>
    %5 = vector.broadcast %4 : vector<1x256xf32> to vector<256x256xf32>
    %6 = arith.addf %3, %5 : vector<256x256xf32>
    %cst_5 = arith.constant 0.000000e+00 : f32
    %7 = vector.broadcast %cst_5 : f32 to vector<256x256xf32>
    %8 = arith.maximumf %6, %7 : vector<256x256xf32>
    %9 = arith.addf %8, %0 : vector<256x256xf32>
    %c0_6 = arith.constant 0 : index
    %c0_7 = arith.constant 0 : index
    %10 = vector.load %arg5[%c0_6, %c0_7] : memref<256x256xf32, #tpu.memory_space<vmem>>, vector<256x256xf32>
    tpu.vector_store %arg5[%c0_6, %c0_7], %9 {strides = array<i32>} : memref<256x256xf32, #tpu.memory_space<vmem>>, vector<256x256xf32>,
    return
  }
  func.func @transform_0(%arg0: i32, %arg1: i32) -> (i32, i32) {
    %c0_i32 = arith.constant 0 : i32
    %c0_i32_0 = arith.constant 0 : i32
    return %arg0, %c0_i32 : i32, i32
  }
  func.func @transform_1(%arg0: i32, %arg1: i32) -> (i32, i32) {
    %c0_i32 = arith.constant 0 : i32
    %c0_i32_0 = arith.constant 0 : i32
    return %arg1, %c0_i32 : i32, i32
  }
  func.func @transform_2(%arg0: i32, %arg1: i32) -> (i32, i32) {
    %c0_i32 = arith.constant 0 : i32
    %c0_i32_0 = arith.constant 0 : i32
    return %c0_i32, %arg1 : i32, i32
  }
  func.func @transform_3(%arg0: i32, %arg1: i32) -> (i32, i32) {
    %c0_i32 = arith.constant 0 : i32
    return %arg0, %arg1 : i32, i32
  }
}

</mosaic_0001>

<llo_original>
// kernel: tpu_custom_call.1
$region0: #{tpu_custom_call.1}
  #allocation0 [shape = 'u32[]', space=smem, size = 0x4, offset = 0x4, fixed_abs, tag = 'smem constant byte address 0x4 - core index']
  #allocation1 [shape = 'u32[72,128]{1,0:T(1,128)}', space=vmem, size = 0x9000, scoped, tag = 'internal scratch']
  %s0 = inlined_call_operand.hbm [shape: f32[512,256], index: 0, kind: input, shape index: {}]
  %s1 = inlined_call_operand.hbm [shape: bf16[256,256], index: 1, kind: input, shape index: {}]
  %s2 = inlined_call_operand.hbm [shape: f32[1,256], index: 2, kind: input, shape index: {}]
  %s3 = inlined_call_operand.hbm [shape: f32[512,256], index: 3, kind: output, shape index: {}]
  %s4 = sld [smem:[#allocation0]]
  $region57: #{tpu_custom_call.1} parent=0
    _
  %s6 = ssub.s32 1, %s4
  %s7 = scalar_select 0, %s6, %s4
  $region1: #{tpu_custom_call.1} parent=0
    #allocation2 [shape = 'u8[524288]{0}', space=vmem, size = 0x80000, scoped, tag = 'input window, operand 0']
    #allocation3 [shape = 's32[2]{0}', space=sflag, size = 0x8, scoped, tag = 'scoped memory for tpu_custom_call.1']
    #allocation4 [shape = 's32[2]{0}', space=sflag, size = 0x8, scoped, tag = 'scoped memory for tpu_custom_call.1']
    #allocation5 [shape = 'u8[131072]{0}', space=vmem, size = 0x20000, scoped, tag = 'input window, operand 1, single buffered']
    #allocation6 [shape = 's32[1]{0}', space=sflag, size = 0x4, scoped, tag = 'scoped memory for tpu_custom_call.1']
    #allocation7 [shape = 'u8[1024]{0}', space=vmem, size = 0x400, scoped, tag = 'input window, operand 2, single buffered']
    #allocation8 [shape = 'u8[524288]{0}', space=vmem, size = 0x80000, scoped, tag = 'output window, operand 0']
    %8 = vsyncpa [#allocation3], 0
    %s9 = scalar_lea.sflag [#allocation3], 1
    %10 = vsyncpa %s9, 0
    %11 = vsyncpa [#allocation6], 0
    %12 = vsyncpa [#allocation4], 0
    %s13 = scalar_lea.sflag [#allocation4], 1
    %14 = vsyncpa %s13, 0
    loop: start=0, step=1, limit=4
    $region2: #{tpu_custom_call.1} parent=1 // loop_pre_header
      _
    $region3: #{tpu_custom_call.1} parent=1 // loop_header
      %s16 = sphi 0, %s20
      %p17 = scmp.ge.s32.totalorder %s16, 4
      %s23 = sphi 0, %s35
      %s24 = sphi 0, %s31
      %s25 = sphi 0, %s23
      %s26 = sphi 0, %s24
      %s27 = sphi 0, %s25
      %s28 = sphi 0, %s26
      %s38 = sphi 0, %s40
      %s41 = sphi 0, %s38
      %s42 = sphi 0, %s41
      %s58 = sphi 0, %s42
      %s64 = sphi 0, %s66
      %s67 = sphi 0, %s64
      %s68 = sphi 0, %s67
      %s84 = sphi 0, %s68
      %s90 = sphi 0, %s92
      %s93 = sphi 0, %s90
      %s94 = sphi 0, %s93
      %s110 = sphi 0, %s94
      %s118 = sphi 0, %s120
      %s121 = sphi 0, %s118
      %s122 = sphi 0, %s121
      %s138 = sphi 0, %s122
    $region4: #{tpu_custom_call.1} parent=1 // loop_header_branch
      %19 = sbr.rel (%p17) target = $region8
    $region5: #{tpu_custom_call.1} parent=1 // loop_body
      %s21 = ssub.s32 %s16, 1
      %s22 = ssub.s32 %s16, 2
      %s29 = sadd.s32 1, %s24
      %p30 = scmp.ge.s32.totalorder %s29, 1
      %s31 = scalar_select %p30, 0, %s29
      %s32 = sadd.s32 1, %s23
      %s33 = scalar_select %p30, %s32, %s23
      %p34 = scmp.ge.s32.totalorder %s33, 2
      %s35 = scalar_select %p34, 0, %s33
      %s36 = ssub.s32 %s23, %s35
      %p37 = scmp.eq.s32.totalorder %s36, 0
      %s39 = sadd.s32 %s38, 1
      %s40 = scalar_select %p37, %s38, %s39
      %p43 = pneg %p37
      %p44 = scmp.eq.s32.totalorder %s16, 1
      %p45 = por %p43, %p44
      %p46 = scmp.ne.s32.totalorder %s38, %s41
      %p47 = scmp.eq.s32.totalorder %s16, 0
      %p48 = por %p46, %p47
      %p49 = scmp.ne.s32.totalorder %s38, %s41
      %p50 = scmp.eq.s32.totalorder %s21, 1
      %p51 = por %p49, %p50
      %p52 = scmp.ne.s32.totalorder %s41, %s42
      %p53 = scmp.eq.s32.totalorder %s21, 0
      %p54 = por %p52, %p53
      %p55 = scmp.ne.s32.totalorder %s41, %s42
      %p56 = scmp.eq.s32.totalorder %s22, 1
      %p57 = por %p55, %p56
      %p59 = scmp.ne.s32.totalorder %s42, %s58
      %p60 = scmp.eq.s32.totalorder %s22, 0
      %p61 = por %p59, %p60
      %s62 = ssub.s32 %s24, %s31
      %p63 = scmp.eq.s32.totalorder %s62, 0
      %s65 = sadd.s32 %s64, 1
      %s66 = scalar_select %p63, %s64, %s65
      %p69 = pneg %p63
      %p70 = scmp.eq.s32.totalorder %s16, 1
      %p71 = por %p69, %p70
      %p72 = scmp.ne.s32.totalorder %s64, %s67
      %p73 = scmp.eq.s32.totalorder %s16, 0
      %p74 = por %p72, %p73
      %p75 = scmp.ne.s32.totalorder %s64, %s67
      %p76 = scmp.eq.s32.totalorder %s21, 1
      %p77 = por %p75, %p76
      %p78 = scmp.ne.s32.totalorder %s67, %s68
      %p79 = scmp.eq.s32.totalorder %s21, 0
      %p80 = por %p78, %p79
      %p81 = scmp.ne.s32.totalorder %s67, %s68
      %p82 = scmp.eq.s32.totalorder %s22, 1
      %p83 = por %p81, %p82
      %p85 = scmp.ne.s32.totalorder %s68, %s84
      %p86 = scmp.eq.s32.totalorder %s22, 0
      %p87 = por %p85, %p86
      %s88 = ssub.s32 %s24, %s31
      %p89 = scmp.eq.s32.totalorder %s88, 0
      %s91 = sadd.s32 %s90, 1
      %s92 = scalar_select %p89, %s90, %s91
      %p95 = pneg %p89
      %p96 = scmp.eq.s32.totalorder %s16, 1
      %p97 = por %p95, %p96
      %p98 = scmp.ne.s32.totalorder %s90, %s93
      %p99 = scmp.eq.s32.totalorder %s16, 0
      %p100 = por %p98, %p99
      %p101 = scmp.ne.s32.totalorder %s90, %s93
      %p102 = scmp.eq.s32.totalorder %s21, 1
      %p103 = por %p101, %p102
      %p104 = scmp.ne.s32.totalorder %s93, %s94
      %p105 = scmp.eq.s32.totalorder %s21, 0
      %p106 = por %p104, %p105
      %p107 = scmp.ne.s32.totalorder %s93, %s94
      %p108 = scmp.eq.s32.totalorder %s22, 1
      %p109 = por %p107, %p108
      %p111 = scmp.ne.s32.totalorder %s94, %s110
      %p112 = scmp.eq.s32.totalorder %s22, 0
      %p113 = por %p111, %p112
      %s114 = ssub.s32 %s23, %s35
      %s115 = ssub.s32 %s24, %s31
      %s116 = sor.u32 %s114, %s115
      %p117 = scmp.eq.s32.totalorder %s116, 0
      %s119 = sadd.s32 %s118, 1
      %s120 = scalar_select %p117, %s118, %s119
      %p123 = pneg %p117
      %p124 = scmp.eq.s32.totalorder %s16, 1
      %p125 = por %p123, %p124
      %p126 = scmp.ne.s32.totalorder %s118, %s121
      %p127 = scmp.eq.s32.totalorder %s16, 0
      %p128 = por %p126, %p127
      %p129 = scmp.ne.s32.totalorder %s118, %s121
      %p130 = scmp.eq.s32.totalorder %s21, 1
      %p131 = por %p129, %p130
      %p132 = scmp.ne.s32.totalorder %s121, %s122
      %p133 = scmp.eq.s32.totalorder %s21, 0
      %p134 = por %p132, %p133
      %p135 = scmp.ne.s32.totalorder %s121, %s122
      %p136 = scmp.eq.s32.totalorder %s22, 1
      %p137 = por %p135, %p136
      %p139 = scmp.ne.s32.totalorder %s122, %s138
      %p140 = scmp.eq.s32.totalorder %s22, 0
      %p141 = por %p139, %p140
      %p142 = scmp.le.s32.totalorder 1, %s16
      %p143 = scmp.lt.s32.totalorder %s16, 3
      %p144 = pnand %p142, %p143
      %p145 = pneg %p144
      // Predicated region
      $region9: #{tpu_custom_call.1} parent=5 // pred_check
        _
      $region10: #{tpu_custom_call.1} parent=5 // pred_check_branch
        %147 = sbr.rel (%p144) target = $region12
      $region11: #{tpu_custom_call.1} parent=5 // pred_region
        %s148 = ssub.s32 %s16, 1
        // Predicated region
        $region13: #{tpu_custom_call.1} parent=11 // pred_check
          %p149 = pneg %p80
        $region14: #{tpu_custom_call.1} parent=11 // pred_check_branch
          %151 = sbr.rel (%p149) target = $region16
        $region15: #{tpu_custom_call.1} parent=11 // pred_region
          %s152 = smul.u32 32, %s26
          %154 = vsyncadd [#allocation6], 0
          %s155 = smul.addr %s152, 2
          %s156 = smul.addr %s155, 4
          %s157 = scalar_lea.hbm %s1, %s156
          %s158 = sshll.u32 %s157, 4
          %s159 = int_to_ptr.hbm [resolvable:$true] %s158
          %s160 = sshll.u32 [#allocation5], 4
          %s161 = int_to_ptr.vmem [resolvable:$true] %s160
          %166 = dma.hbm_to_vmem [thread:$0]  %s159, 4096, %s161, [#allocation6], 128, 128, 8
        $region16: #{tpu_custom_call.1} parent=11 // pred_fallthru
          _
        // Predicated region
        $region17: #{tpu_custom_call.1} parent=11 // pred_check
          %p167 = pneg %p106
        $region18: #{tpu_custom_call.1} parent=11 // pred_check_branch
          %169 = sbr.rel (%p167) target = $region20
        $region19: #{tpu_custom_call.1} parent=11 // pred_region
          %s170 = smul.u32 2, %s26
          %172 = vsyncadd [#allocation6], 0
          %s173 = scalar_lea.hbm %s2, %s170
          %s175 = sshll.u32 %s173, 4
          %s176 = int_to_ptr.hbm [resolvable:$true] %s175
          %s177 = sshll.u32 [#allocation7], 4
          %s178 = int_to_ptr.vmem [resolvable:$true] %s177
          %180 = dma.hbm_to_vmem [thread:$0]  %s176, 32, %s178, [#allocation6]
        $region20: #{tpu_custom_call.1} parent=11 // pred_fallthru
          _
      $region12: #{tpu_custom_call.1} parent=5 // pred_fallthru
        _
      %p181 = scmp.lt.s32.totalorder %s16, 2
      // Predicated region
      $region21: #{tpu_custom_call.1} parent=5 // pred_check
        %p182 = pneg %p181
      $region22: #{tpu_custom_call.1} parent=5 // pred_check_branch
        %184 = sbr.rel (%p182) target = $region24
      $region23: #{tpu_custom_call.1} parent=5 // pred_region
        // Predicated region
        $region25: #{tpu_custom_call.1} parent=23 // pred_check
          %p185 = pneg %p48
        $region26: #{tpu_custom_call.1} parent=23 // pred_check_branch
          %187 = sbr.rel (%p185) target = $region28
        $region27: #{tpu_custom_call.1} parent=23 // pred_region
          %s188 = sand.u32 %s38, 1
          %s189 = scalar_lea.sflag [#allocation3], %s188
          %s190 = sand.u32 %s38, 1
          %s191 = smul.addr %s190, 512
          %s192 = scalar_lea.vmem [#allocation2], %s191
          %s193 = smul.u32 32, %s23
          %195 = vsyncadd %s189, 0
          %s196 = smul.addr %s193, 2
          %s197 = smul.addr %s196, 8
          %s198 = scalar_lea.hbm %s0, %s197
          %s199 = sshll.u32 %s198, 4
          %s200 = int_to_ptr.hbm [resolvable:$true] %s199
          %s201 = sshll.u32 %s192, 4
          %s202 = int_to_ptr.vmem [resolvable:$true] %s201
          %207 = dma.hbm_to_vmem [thread:$0]  %s200, 8192, %s202, %s189, 256, 256, 16
        $region28: #{tpu_custom_call.1} parent=23 // pred_fallthru
          _
      $region24: #{tpu_custom_call.1} parent=5 // pred_fallthru
        _
      %p208 = scmp.le.s32.totalorder 1, %s16
      %p209 = scmp.lt.s32.totalorder %s16, 3
      %p210 = pnand %p208, %p209
      %p211 = pneg %p210
      // Predicated region
      $region29: #{tpu_custom_call.1} parent=5 // pred_check
        _
      $region30: #{tpu_custom_call.1} parent=5 // pred_check_branch
        %213 = sbr.rel (%p210) target = $region32
      $region31: #{tpu_custom_call.1} parent=5 // pred_region
        %s214 = ssub.s32 %s16, 1
        %s215 = sand.u32 %s41, 1
        %s216 = scalar_lea.sflag [#allocation3], %s215
        %s217 = sand.u32 %s41, 1
        %s218 = smul.addr %s217, 512
        %s219 = scalar_lea.vmem [#allocation2], %s218
        // Predicated region
        $region33: #{tpu_custom_call.1} parent=31 // pred_check
          %p220 = pneg %p54
        $region34: #{tpu_custom_call.1} parent=31 // pred_check_branch
          %222 = sbr.rel (%p220) target = $region36
        $region35: #{tpu_custom_call.1} parent=31 // pred_region
          %224 = dma.done %s216, 8192
        $region36: #{tpu_custom_call.1} parent=31 // pred_fallthru
          _
        // Predicated region
        $region37: #{tpu_custom_call.1} parent=31 // pred_check
          %p225 = pneg %p80
        $region38: #{tpu_custom_call.1} parent=31 // pred_check_branch
          %227 = sbr.rel (%p225) target = $region40
        $region39: #{tpu_custom_call.1} parent=31 // pred_region
          %229 = dma.done [#allocation6], 4096
        $region40: #{tpu_custom_call.1} parent=31 // pred_fallthru
          _
        // Predicated region
        $region41: #{tpu_custom_call.1} parent=31 // pred_check
          %p230 = pneg %p106
        $region42: #{tpu_custom_call.1} parent=31 // pred_check_branch
          %232 = sbr.rel (%p230) target = $region44
        $region43: #{tpu_custom_call.1} parent=31 // pred_region
          %234 = dma.done [#allocation6], 32
        $region44: #{tpu_custom_call.1} parent=31 // pred_fallthru
          _
        %s235 = sand.u32 %s41, 1
        %s236 = scalar_lea.sflag [#allocation3], %s235
        %s237 = sand.u32 %s41, 1
        %s238 = smul.addr %s237, 512
        %s239 = scalar_lea.vmem [#allocation2], %s238
        %p240 = pneg %p54
        %p241 = pneg %p51
        %p242 = pneg %p80
        %p243 = pneg %p77
        %p244 = pneg %p106
        %p245 = pneg %p103
        %p246 = pneg %p134
        %p247 = pneg %p131
        %s248 = sand.u32 %s121, 1
        %s249 = scalar_lea.sflag [#allocation4], %s248
        %s250 = sand.u32 %s121, 1
        %s251 = smul.addr %s250, 512
        %s252 = scalar_lea.vmem [#allocation8], %s251
        %s253 = smul.u32 32, %s25
        %s254 = smul.u32 32, %s26
        %s255 = smul.u32 2, %s26
        %s256 = smul.u32 32, %s25
        %s257 = smul.u32 2, %s26
        %v258 = vld [vmem:[%s219] sm:$0xff]
        %v259 = vld [vmem:[%s219 + $0x8] sm:$0xff]
        %v260 = vld [vmem:[%s219 + $0x10] sm:$0xff]
        %v261 = vld [vmem:[%s219 + $0x18] sm:$0xff]
        %v262 = vld [vmem:[%s219 + $0x20] sm:$0xff]
        %v263 = vld [vmem:[%s219 + $0x28] sm:$0xff]
        %v264 = vld [vmem:[%s219 + $0x30] sm:$0xff]
        %v265 = vld [vmem:[%s219 + $0x38] sm:$0xff]
        %v266 = vld [vmem:[%s219 + $0x40] sm:$0xff]
        %v267 = vld [vmem:[%s219 + $0x48] sm:$0xff]
        %v268 = vld [vmem:[%s219 + $0x50] sm:$0xff]
        %v269 = vld [vmem:[%s219 + $0x58] sm:$0xff]
        %v270 = vld [vmem:[%s219 + $0x60] sm:$0xff]
        %v271 = vld [vmem:[%s219 + $0x68] sm:$0xff]
        %v272 = vld [vmem:[%s219 + $0x70] sm:$0xff]
        %v273 = vld [vmem:[%s219 + $0x78] sm:$0xff]
        %v274 = vld [vmem:[%s219 + $0x80] sm:$0xff]
        %v275 = vld [vmem:[%s219 + $0x88] sm:$0xff]
        %v276 = vld [vmem:[%s219 + $0x90] sm:$0xff]
        %v277 = vld [vmem:[%s219 + $0x98] sm:$0xff]
        %v278 = vld [vmem:[%s219 + $0xa0] sm:$0xff]
        %v279 = vld [vmem:[%s219 + $0xa8] sm:$0xff]
        %v280 = vld [vmem:[%s219 + $0xb0] sm:$0xff]
        %v281 = vld [vmem:[%s219 + $0xb8] sm:$0xff]
        %v282 = vld [vmem:[%s219 + $0xc0] sm:$0xff]
        %v283 = vld [vmem:[%s219 + $0xc8] sm:$0xff]
        %v284 = vld [vmem:[%s219 + $0xd0] sm:$0xff]
        %v285 = vld [vmem:[%s219 + $0xd8] sm:$0xff]
        %v286 = vld [vmem:[%s219 + $0xe0] sm:$0xff]
        %v287 = vld [vmem:[%s219 + $0xe8] sm:$0xff]
        %v288 = vld [vmem:[%s219 + $0xf0] sm:$0xff]
        %v289 = vld [vmem:[%s219 + $0xf8] sm:$0xff]
        %v290 = vld [vmem:[%s219 + $0x100] sm:$0xff]
        %v291 = vld [vmem:[%s219 + $0x108] sm:$0xff]
        %v292 = vld [vmem:[%s219 + $0x110] sm:$0xff]
        %v293 = vld [vmem:[%s219 + $0x118] sm:$0xff]
        %v294 = vld [vmem:[%s219 + $0x120] sm:$0xff]
        %v295 = vld [vmem:[%s219 + $0x128] sm:$0xff]
        %v296 = vld [vmem:[%s219 + $0x130] sm:$0xff]
        %v297 = vld [vmem:[%s219 + $0x138] sm:$0xff]
        %v298 = vld [vmem:[%s219 + $0x140] sm:$0xff]
        %v299 = vld [vmem:[%s219 + $0x148] sm:$0xff]
        %v300 = vld [vmem:[%s219 + $0x150] sm:$0xff]
        %v301 = vld [vmem:[%s219 + $0x158] sm:$0xff]
        %v302 = vld [vmem:[%s219 + $0x160] sm:$0xff]
        %v303 = vld [vmem:[%s219 + $0x168] sm:$0xff]
        %v304 = vld [vmem:[%s219 + $0x170] sm:$0xff]
        %v305 = vld [vmem:[%s219 + $0x178] sm:$0xff]
        %v306 = vld [vmem:[%s219 + $0x180] sm:$0xff]
        %v307 = vld [vmem:[%s219 + $0x188] sm:$0xff]
        %v308 = vld [vmem:[%s219 + $0x190] sm:$0xff]
        %v309 = vld [vmem:[%s219 + $0x198] sm:$0xff]
        %v310 = vld [vmem:[%s219 + $0x1a0] sm:$0xff]
        %v311 = vld [vmem:[%s219 + $0x1a8] sm:$0xff]
        %v312 = vld [vmem:[%s219 + $0x1b0] sm:$0xff]
        %v313 = vld [vmem:[%s219 + $0x1b8] sm:$0xff]
        %v314 = vld [vmem:[%s219 + $0x1c0] sm:$0xff]
        %v315 = vld [vmem:[%s219 + $0x1c8] sm:$0xff]
        %v316 = vld [vmem:[%s219 + $0x1d0] sm:$0xff]
        %v317 = vld [vmem:[%s219 + $0x1d8] sm:$0xff]
        %v318 = vld [vmem:[%s219 + $0x1e0] sm:$0xff]
        %v319 = vld [vmem:[%s219 + $0x1e8] sm:$0xff]
        %v320 = vld [vmem:[%s219 + $0x1f0] sm:$0xff]
        %v321 = vld [vmem:[%s219 + $0x1f8] sm:$0xff]
        %v322 = vld [vmem:[#allocation5] sm:$0xff]
        %v323 = vld [vmem:[#allocation5 + $0x8] sm:$0xff]
        %v324 = vld [vmem:[#allocation5 + $0x10] sm:$0xff]
        %v325 = vld [vmem:[#allocation5 + $0x18] sm:$0xff]
        %v326 = vld [vmem:[#allocation5 + $0x20] sm:$0xff]
        %v327 = vld [vmem:[#allocation5 + $0x28] sm:$0xff]
        %v328 = vld [vmem:[#allocation5 + $0x30] sm:$0xff]
        %v329 = vld [vmem:[#allocation5 + $0x38] sm:$0xff]
        %v330 = vld [vmem:[#allocation5 + $0x40] sm:$0xff]
        %v331 = vld [vmem:[#allocation5 + $0x48] sm:$0xff]
        %v332 = vld [vmem:[#allocation5 + $0x50] sm:$0xff]
        %v333 = vld [vmem:[#allocation5 + $0x58] sm:$0xff]
        %v334 = vld [vmem:[#allocation5 + $0x60] sm:$0xff]
        %v335 = vld [vmem:[#allocation5 + $0x68] sm:$0xff]
        %v336 = vld [vmem:[#allocation5 + $0x70] sm:$0xff]
        %v337 = vld [vmem:[#allocation5 + $0x78] sm:$0xff]
        %v338 = vld [vmem:[#allocation5 + $0x80] sm:$0xff]
        %v339 = vld [vmem:[#allocation5 + $0x88] sm:$0xff]
        %v340 = vld [vmem:[#allocation5 + $0x90] sm:$0xff]
        %v341 = vld [vmem:[#allocation5 + $0x98] sm:$0xff]
        %v342 = vld [vmem:[#allocation5 + $0xa0] sm:$0xff]
        %v343 = vld [vmem:[#allocation5 + $0xa8] sm:$0xff]
        %v344 = vld [vmem:[#allocation5 + $0xb0] sm:$0xff]
        %v345 = vld [vmem:[#allocation5 + $0xb8] sm:$0xff]
        %v346 = vld [vmem:[#allocation5 + $0xc0] sm:$0xff]
        %v347 = vld [vmem:[#allocation5 + $0xc8] sm:$0xff]
        %v348 = vld [vmem:[#allocation5 + $0xd0] sm:$0xff]
        %v349 = vld [vmem:[#allocation5 + $0xd8] sm:$0xff]
        %v350 = vld [vmem:[#allocation5 + $0xe0] sm:$0xff]
        %v351 = vld [vmem:[#allocation5 + $0xe8] sm:$0xff]
        %v352 = vld [vmem:[#allocation5 + $0xf0] sm:$0xff]
        %v353 = vld [vmem:[#allocation5 + $0xf8] sm:$0xff]
        %v354 = vpack.c.bf16 %v260, %v258
        %v355 = vpack.c.bf16 %v261, %v259
        %v356 = vpack.c.bf16 %v264, %v262
        %v357 = vpack.c.bf16 %v265, %v263
        %v358 = vpack.c.bf16 %v268, %v266
        %v359 = vpack.c.bf16 %v269, %v267
        %v360 = vpack.c.bf16 %v272, %v270
        %v361 = vpack.c.bf16 %v273, %v271
        %v362 = vpack.c.bf16 %v276, %v274
        %v363 = vpack.c.bf16 %v277, %v275
        %v364 = vpack.c.bf16 %v280, %v278
        %v365 = vpack.c.bf16 %v281, %v279
        %v366 = vpack.c.bf16 %v284, %v282
        %v367 = vpack.c.bf16 %v285, %v283
        %v368 = vpack.c.bf16 %v288, %v286
        %v369 = vpack.c.bf16 %v289, %v287
        %v370 = vpack.c.bf16 %v292, %v290
        %v371 = vpack.c.bf16 %v293, %v291
        %v372 = vpack.c.bf16 %v296, %v294
        %v373 = vpack.c.bf16 %v297, %v295
        %v374 = vpack.c.bf16 %v300, %v298
        %v375 = vpack.c.bf16 %v301, %v299
        %v376 = vpack.c.bf16 %v304, %v302
        %v377 = vpack.c.bf16 %v305, %v303
        %v378 = vpack.c.bf16 %v308, %v306
        %v379 = vpack.c.bf16 %v309, %v307
        %v380 = vpack.c.bf16 %v312, %v310
        %v381 = vpack.c.bf16 %v313, %v311
        %v382 = vpack.c.bf16 %v316, %v314
        %v383 = vpack.c.bf16 %v317, %v315
        %v384 = vpack.c.bf16 %v320, %v318
        %v385 = vpack.c.bf16 %v321, %v319
        %v386 = vld [vmem:[#allocation7] sm:$0x3]
        %v388 = vperm.slane %v386, 0
        %v389 = vperm.slane %v386, 1
        %v424 = vunpack.c.l.b16 %v322
        %v425 = vunpack.c.h.b16 %v322
        %v426 = vunpack.c.l.b16 %v323
        %v427 = vunpack.c.h.b16 %v323
        %v428 = vunpack.c.l.b16 %v324
        %v429 = vunpack.c.h.b16 %v324
        %v430 = vunpack.c.l.b16 %v325
        %v431 = vunpack.c.h.b16 %v325
        %v432 = vunpack.c.l.b16 %v326
        %v433 = vunpack.c.h.b16 %v326
        %v434 = vunpack.c.l.b16 %v327
        %v435 = vunpack.c.h.b16 %v327
        %v436 = vunpack.c.l.b16 %v328
        %v437 = vunpack.c.h.b16 %v328
        %v438 = vunpack.c.l.b16 %v329
        %v439 = vunpack.c.h.b16 %v329
        %v440 = vunpack.c.l.b16 %v330
        %v441 = vunpack.c.h.b16 %v330
        %v442 = vunpack.c.l.b16 %v331
        %v443 = vunpack.c.h.b16 %v331
        %v444 = vunpack.c.l.b16 %v332
        %v445 = vunpack.c.h.b16 %v332
        %v446 = vunpack.c.l.b16 %v333
        %v447 = vunpack.c.h.b16 %v333
        %v448 = vunpack.c.l.b16 %v334
        %v449 = vunpack.c.h.b16 %v334
        %v450 = vunpack.c.l.b16 %v335
        %v451 = vunpack.c.h.b16 %v335
        %v452 = vunpack.c.l.b16 %v336
        %v453 = vunpack.c.h.b16 %v336
        %v454 = vunpack.c.l.b16 %v337
        %v455 = vunpack.c.h.b16 %v337
        %v456 = vunpack.c.l.b16 %v338
        %v457 = vunpack.c.h.b16 %v338
        %v458 = vunpack.c.l.b16 %v339
        %v459 = vunpack.c.h.b16 %v339
        %v460 = vunpack.c.l.b16 %v340
        %v461 = vunpack.c.h.b16 %v340
        %v462 = vunpack.c.l.b16 %v341
        %v463 = vunpack.c.h.b16 %v341
        %v464 = vunpack.c.l.b16 %v342
        %v465 = vunpack.c.h.b16 %v342
        %v466 = vunpack.c.l.b16 %v343
        %v467 = vunpack.c.h.b16 %v343
        %v468 = vunpack.c.l.b16 %v344
        %v469 = vunpack.c.h.b16 %v344
        %v470 = vunpack.c.l.b16 %v345
        %v471 = vunpack.c.h.b16 %v345
        %v472 = vunpack.c.l.b16 %v346
        %v473 = vunpack.c.h.b16 %v346
        %v474 = vunpack.c.l.b16 %v347
        %v475 = vunpack.c.h.b16 %v347
        %v476 = vunpack.c.l.b16 %v348
        %v477 = vunpack.c.h.b16 %v348
        %v478 = vunpack.c.l.b16 %v349
        %v479 = vunpack.c.h.b16 %v349
        %v480 = vunpack.c.l.b16 %v350
        %v481 = vunpack.c.h.b16 %v350
        %v482 = vunpack.c.l.b16 %v351
        %v483 = vunpack.c.h.b16 %v351
        %v484 = vunpack.c.l.b16 %v352
        %v485 = vunpack.c.h.b16 %v352
        %v486 = vunpack.c.l.b16 %v353
        %v487 = vunpack.c.h.b16 %v353
        %v488 = vpack.c.b16 %v426, %v424
        %v489 = vpack.c.b16 %v427, %v425
        %v490 = vpack.c.b16 %v430, %v428
        %v491 = vpack.c.b16 %v431, %v429
        %v492 = vpack.c.b16 %v434, %v432
        %v493 = vpack.c.b16 %v435, %v433
        %v494 = vpack.c.b16 %v438, %v436
        %v495 = vpack.c.b16 %v439, %v437
        %v496 = vpack.c.b16 %v442, %v440
        %v497 = vpack.c.b16 %v443, %v441
        %v498 = vpack.c.b16 %v446, %v444
        %v499 = vpack.c.b16 %v447, %v445
        %v500 = vpack.c.b16 %v450, %v448
        %v501 = vpack.c.b16 %v451, %v449
        %v502 = vpack.c.b16 %v454, %v452
        %v503 = vpack.c.b16 %v455, %v453
        %v504 = vpack.c.b16 %v458, %v456
        %v505 = vpack.c.b16 %v459, %v457
        %v506 = vpack.c.b16 %v462, %v460
        %v507 = vpack.c.b16 %v463, %v461
        %v508 = vpack.c.b16 %v466, %v464
        %v509 = vpack.c.b16 %v467, %v465
        %v510 = vpack.c.b16 %v470, %v468
        %v511 = vpack.c.b16 %v471, %v469
        %v512 = vpack.c.b16 %v474, %v472
        %v513 = vpack.c.b16 %v475, %v473
        %v514 = vpack.c.b16 %v478, %v476
        %v515 = vpack.c.b16 %v479, %v477
        %v516 = vpack.c.b16 %v482, %v480
        %v517 = vpack.c.b16 %v483, %v481
        %v518 = vpack.c.b16 %v486, %v484
        %v519 = vpack.c.b16 %v487, %v485
        %552 = vmatpush.bf16.xpose.msra.mxu0 %v502
        %553 = vmatpush.bf16.xpose.msra.mxu0 %v500
        %554 = vmatpush.bf16.xpose.msra.mxu0 %v498
        %555 = vmatpush.bf16.xpose.msra.mxu0 %v496
        %556 = vmatpush.bf16.xpose.msra.mxu0 %v494
        %557 = vmatpush.bf16.xpose.msra.mxu0 %v492
        %558 = vmatpush.bf16.xpose.msra.mxu0 %v490
        %559 = vmatpush.bf16.xpose.msra.mxu0 %v488
        %560 = vmatmul.bf16.gmra.mxu0 %v354
        %v561 = vpop.f32.mrf.mxu0
        %v562 = vadd.f32 %v388, %v561
        %v563 = vpop.f32.mrf.mxu0
        %v564 = vadd.f32 %v388, %v563
        %565 = vmatmul.bf16.gmra.mxu0 %v356
        %v566 = vpop.f32.mrf.mxu0
        %v567 = vadd.f32 %v388, %v566
        %v568 = vpop.f32.mrf.mxu0
        %v569 = vadd.f32 %v388, %v568
        %570 = vmatmul.bf16.gmra.mxu0 %v358
        %v571 = vpop.f32.mrf.mxu0
        %v572 = vadd.f32 %v388, %v571
        %v573 = vpop.f32.mrf.mxu0
        %v574 = vadd.f32 %v388, %v573
        %575 = vmatmul.bf16.gmra.mxu0 %v360
        %v576 = vpop.f32.mrf.mxu0
        %v577 = vadd.f32 %v388, %v576
        %v578 = vpop.f32.mrf.mxu0
        %v579 = vadd.f32 %v388, %v578
        %580 = vmatmul.bf16.gmra.mxu0 %v362
        %v581 = vpop.f32.mrf.mxu0
        %v582 = vadd.f32 %v388, %v581
        %v583 = vpop.f32.mrf.mxu0
        %v584 = vadd.f32 %v388, %v583
        %585 = vmatmul.bf16.gmra.mxu0 %v364
        %v586 = vpop.f32.mrf.mxu0
        %v587 = vadd.f32 %v388, %v586
        %v588 = vpop.f32.mrf.mxu0
        %v589 = vadd.f32 %v388, %v588
        %590 = vmatmul.bf16.gmra.mxu0 %v366
        %v591 = vpop.f32.mrf.mxu0
        %v592 = vadd.f32 %v388, %v591
        %v593 = vpop.f32.mrf.mxu0
        %v594 = vadd.f32 %v388, %v593
        %595 = vmatmul.bf16.gmra.mxu0 %v368
        %v596 = vpop.f32.mrf.mxu0
        %v597 = vadd.f32 %v388, %v596
        %v598 = vpop.f32.mrf.mxu0
        %v599 = vadd.f32 %v388, %v598
        %600 = vmatmul.bf16.gmra.mxu0 %v370
        %v601 = vpop.f32.mrf.mxu0
        %v602 = vadd.f32 %v388, %v601
        %v603 = vpop.f32.mrf.mxu0
        %v604 = vadd.f32 %v388, %v603
        %605 = vmatmul.bf16.gmra.mxu0 %v372
        %v606 = vpop.f32.mrf.mxu0
        %v607 = vadd.f32 %v388, %v606
        %v608 = vpop.f32.mrf.mxu0
        %v609 = vadd.f32 %v388, %v608
        %610 = vmatmul.bf16.gmra.mxu0 %v374
        %v611 = vpop.f32.mrf.mxu0
        %v612 = vadd.f32 %v388, %v611
        %v613 = vpop.f32.mrf.mxu0
        %v614 = vadd.f32 %v388, %v613
        %615 = vmatmul.bf16.gmra.mxu0 %v376
        %v616 = vpop.f32.mrf.mxu0
        %v617 = vadd.f32 %v388, %v616
        %v618 = vpop.f32.mrf.mxu0
        %v619 = vadd.f32 %v388, %v618
        %620 = vmatmul.bf16.gmra.mxu0 %v378
        %v621 = vpop.f32.mrf.mxu0
        %v622 = vadd.f32 %v388, %v621
        %v623 = vpop.f32.mrf.mxu0
        %v624 = vadd.f32 %v388, %v623
        %625 = vmatmul.bf16.gmra.mxu0 %v380
        %v626 = vpop.f32.mrf.mxu0
        %v627 = vadd.f32 %v388, %v626
        %v628 = vpop.f32.mrf.mxu0
        %v629 = vadd.f32 %v388, %v628
        %630 = vmatmul.bf16.gmra.mxu0 %v382
        %v631 = vpop.f32.mrf.mxu0
        %v632 = vadd.f32 %v388, %v631
        %v633 = vpop.f32.mrf.mxu0
        %v634 = vadd.f32 %v388, %v633
        %635 = vmatmul.bf16.gmra.mxu0 %v384
        %v636 = vpop.f32.mrf.mxu0
        %v637 = vadd.f32 %v388, %v636
        %v638 = vpop.f32.mrf.mxu0
        %v639 = vadd.f32 %v388, %v638
        %640 = vdwg.mxu0
        %641 = vmatpush.bf16.xpose.msra.mxu0 %v503
        %642 = vmatpush.bf16.xpose.msra.mxu0 %v501
        %643 = vmatpush.bf16.xpose.msra.mxu0 %v499
        %644 = vmatpush.bf16.xpose.msra.mxu0 %v497
        %645 = vmatpush.bf16.xpose.msra.mxu0 %v495
        %646 = vmatpush.bf16.xpose.msra.mxu0 %v493
        %647 = vmatpush.bf16.xpose.msra.mxu0 %v491
        %648 = vmatpush.bf16.xpose.msra.mxu0 %v489
        %649 = vmatmul.bf16.gmra.mxu0 %v355
        %v650 = vpop.f32.mrf.mxu0
        %v651 = vadd.f32 %v562, %v650
        %v652 = vpop.f32.mrf.mxu0
        %v653 = vadd.f32 %v564, %v652
        %654 = vmatmul.bf16.gmra.mxu0 %v357
        %v655 = vpop.f32.mrf.mxu0
        %v656 = vadd.f32 %v567, %v655
        %v657 = vpop.f32.mrf.mxu0
        %v658 = vadd.f32 %v569, %v657
        %659 = vmatmul.bf16.gmra.mxu0 %v359
        %v660 = vpop.f32.mrf.mxu0
        %v661 = vadd.f32 %v572, %v660
        %v662 = vpop.f32.mrf.mxu0
        %v663 = vadd.f32 %v574, %v662
        %664 = vmatmul.bf16.gmra.mxu0 %v361
        %v665 = vpop.f32.mrf.mxu0
        %v666 = vadd.f32 %v577, %v665
        %v667 = vpop.f32.mrf.mxu0
        %v668 = vadd.f32 %v579, %v667
        %669 = vmatmul.bf16.gmra.mxu0 %v363
        %v670 = vpop.f32.mrf.mxu0
        %v671 = vadd.f32 %v582, %v670
        %v672 = vpop.f32.mrf.mxu0
        %v673 = vadd.f32 %v584, %v672
        %674 = vmatmul.bf16.gmra.mxu0 %v365
        %v675 = vpop.f32.mrf.mxu0
        %v676 = vadd.f32 %v587, %v675
        %v677 = vpop.f32.mrf.mxu0
        %v678 = vadd.f32 %v589, %v677
        %679 = vmatmul.bf16.gmra.mxu0 %v367
        %v680 = vpop.f32.mrf.mxu0
        %v681 = vadd.f32 %v592, %v680
        %v682 = vpop.f32.mrf.mxu0
        %v683 = vadd.f32 %v594, %v682
        %684 = vmatmul.bf16.gmra.mxu0 %v369
        %v685 = vpop.f32.mrf.mxu0
        %v686 = vadd.f32 %v597, %v685
        %v687 = vpop.f32.mrf.mxu0
        %v688 = vadd.f32 %v599, %v687
        %689 = vmatmul.bf16.gmra.mxu0 %v371
        %v690 = vpop.f32.mrf.mxu0
        %v691 = vadd.f32 %v602, %v690
        %v692 = vpop.f32.mrf.mxu0
        %v693 = vadd.f32 %v604, %v692
        %694 = vmatmul.bf16.gmra.mxu0 %v373
        %v695 = vpop.f32.mrf.mxu0
        %v696 = vadd.f32 %v607, %v695
        %v697 = vpop.f32.mrf.mxu0
        %v698 = vadd.f32 %v609, %v697
        %699 = vmatmul.bf16.gmra.mxu0 %v375
        %v700 = vpop.f32.mrf.mxu0
        %v701 = vadd.f32 %v612, %v700
        %v702 = vpop.f32.mrf.mxu0
        %v703 = vadd.f32 %v614, %v702
        %704 = vmatmul.bf16.gmra.mxu0 %v377
        %v705 = vpop.f32.mrf.mxu0
        %v706 = vadd.f32 %v617, %v705
        %v707 = vpop.f32.mrf.mxu0
        %v708 = vadd.f32 %v619, %v707
        %709 = vmatmul.bf16.gmra.mxu0 %v379
        %v710 = vpop.f32.mrf.mxu0
        %v711 = vadd.f32 %v622, %v710
        %v712 = vpop.f32.mrf.mxu0
        %v713 = vadd.f32 %v624, %v712
        %714 = vmatmul.bf16.gmra.mxu0 %v381
        %v715 = vpop.f32.mrf.mxu0
        %v716 = vadd.f32 %v627, %v715
        %v717 = vpop.f32.mrf.mxu0
        %v718 = vadd.f32 %v629, %v717
        %719 = vmatmul.bf16.gmra.mxu0 %v383
        %v720 = vpop.f32.mrf.mxu0
        %v721 = vadd.f32 %v632, %v720
        %v722 = vpop.f32.mrf.mxu0
        %v723 = vadd.f32 %v634, %v722
        %724 = vmatmul.bf16.gmra.mxu0 %v385
        %v725 = vpop.f32.mrf.mxu0
        %v726 = vadd.f32 %v637, %v725
        %v727 = vpop.f32.mrf.mxu0
        %v728 = vadd.f32 %v639, %v727
        %729 = vdwg.mxu0
        %730 = vmatpush.bf16.xpose.msra.mxu0 %v518
        %731 = vmatpush.bf16.xpose.msra.mxu0 %v516
        %732 = vmatpush.bf16.xpose.msra.mxu0 %v514
        %733 = vmatpush.bf16.xpose.msra.mxu0 %v512
        %734 = vmatpush.bf16.xpose.msra.mxu0 %v510
        %735 = vmatpush.bf16.xpose.msra.mxu0 %v508
        %736 = vmatpush.bf16.xpose.msra.mxu0 %v506
        %737 = vmatpush.bf16.xpose.msra.mxu0 %v504
        %738 = vmatmul.bf16.gmra.mxu0 %v354
        %v739 = vpop.f32.mrf.mxu0
        %v740 = vadd.f32 %v389, %v739
        %v741 = vpop.f32.mrf.mxu0
        %v742 = vadd.f32 %v389, %v741
        %743 = vmatmul.bf16.gmra.mxu0 %v356
        %v744 = vpop.f32.mrf.mxu0
        %v745 = vadd.f32 %v389, %v744
        %v746 = vpop.f32.mrf.mxu0
        %v747 = vadd.f32 %v389, %v746
        %748 = vmatmul.bf16.gmra.mxu0 %v358
        %v749 = vpop.f32.mrf.mxu0
        %v750 = vadd.f32 %v389, %v749
        %v751 = vpop.f32.mrf.mxu0
        %v752 = vadd.f32 %v389, %v751
        %753 = vmatmul.bf16.gmra.mxu0 %v360
        %v754 = vpop.f32.mrf.mxu0
        %v755 = vadd.f32 %v389, %v754
        %v756 = vpop.f32.mrf.mxu0
        %v757 = vadd.f32 %v389, %v756
        %758 = vmatmul.bf16.gmra.mxu0 %v362
        %v759 = vpop.f32.mrf.mxu0
        %v760 = vadd.f32 %v389, %v759
        %v761 = vpop.f32.mrf.mxu0
        %v762 = vadd.f32 %v389, %v761
        %763 = vmatmul.bf16.gmra.mxu0 %v364
        %v764 = vpop.f32.mrf.mxu0
        %v765 = vadd.f32 %v389, %v764
        %v766 = vpop.f32.mrf.mxu0
        %v767 = vadd.f32 %v389, %v766
        %768 = vmatmul.bf16.gmra.mxu0 %v366
        %v769 = vpop.f32.mrf.mxu0
        %v770 = vadd.f32 %v389, %v769
        %v771 = vpop.f32.mrf.mxu0
        %v772 = vadd.f32 %v389, %v771
        %773 = vmatmul.bf16.gmra.mxu0 %v368
        %v774 = vpop.f32.mrf.mxu0
        %v775 = vadd.f32 %v389, %v774
        %v776 = vpop.f32.mrf.mxu0
        %v777 = vadd.f32 %v389, %v776
        %778 = vmatmul.bf16.gmra.mxu0 %v370
        %v779 = vpop.f32.mrf.mxu0
        %v780 = vadd.f32 %v389, %v779
        %v781 = vpop.f32.mrf.mxu0
        %v782 = vadd.f32 %v389, %v781
        %783 = vmatmul.bf16.gmra.mxu0 %v372
        %v784 = vpop.f32.mrf.mxu0
        %v785 = vadd.f32 %v389, %v784
        %v786 = vpop.f32.mrf.mxu0
        %v787 = vadd.f32 %v389, %v786
        %788 = vmatmul.bf16.gmra.mxu0 %v374
        %v789 = vpop.f32.mrf.mxu0
        %v790 = vadd.f32 %v389, %v789
        %v791 = vpop.f32.mrf.mxu0
        %v792 = vadd.f32 %v389, %v791
        %793 = vmatmul.bf16.gmra.mxu0 %v376
        %v794 = vpop.f32.mrf.mxu0
        %v795 = vadd.f32 %v389, %v794
        %v796 = vpop.f32.mrf.mxu0
        %v797 = vadd.f32 %v389, %v796
        %798 = vmatmul.bf16.gmra.mxu0 %v378
        %v799 = vpop.f32.mrf.mxu0
        %v800 = vadd.f32 %v389, %v799
        %v801 = vpop.f32.mrf.mxu0
        %v802 = vadd.f32 %v389, %v801
        %803 = vmatmul.bf16.gmra.mxu0 %v380
        %v804 = vpop.f32.mrf.mxu0
        %v805 = vadd.f32 %v389, %v804
        %v806 = vpop.f32.mrf.mxu0
        %v807 = vadd.f32 %v389, %v806
        %808 = vmatmul.bf16.gmra.mxu0 %v382
        %v809 = vpop.f32.mrf.mxu0
        %v810 = vadd.f32 %v389, %v809
        %v811 = vpop.f32.mrf.mxu0
        %v812 = vadd.f32 %v389, %v811
        %813 = vmatmul.bf16.gmra.mxu0 %v384
        %v814 = vpop.f32.mrf.mxu0
        %v815 = vadd.f32 %v389, %v814
        %v816 = vpop.f32.mrf.mxu0
        %v817 = vadd.f32 %v389, %v816
        %818 = vdwg.mxu0
        %819 = vmatpush.bf16.xpose.msra.mxu0 %v519
        %820 = vmatpush.bf16.xpose.msra.mxu0 %v517
        %821 = vmatpush.bf16.xpose.msra.mxu0 %v515
        %822 = vmatpush.bf16.xpose.msra.mxu0 %v513
        %823 = vmatpush.bf16.xpose.msra.mxu0 %v511
        %824 = vmatpush.bf16.xpose.msra.mxu0 %v509
        %825 = vmatpush.bf16.xpose.msra.mxu0 %v507
        %826 = vmatpush.bf16.xpose.msra.mxu0 %v505
        %827 = vmatmul.bf16.gmra.mxu0 %v355
        %v828 = vpop.f32.mrf.mxu0
        %v829 = vadd.f32 %v740, %v828
        %v830 = vpop.f32.mrf.mxu0
        %v831 = vadd.f32 %v742, %v830
        %832 = vmatmul.bf16.gmra.mxu0 %v357
        %v833 = vpop.f32.mrf.mxu0
        %v834 = vadd.f32 %v745, %v833
        %v835 = vpop.f32.mrf.mxu0
        %v836 = vadd.f32 %v747, %v835
        %837 = vmatmul.bf16.gmra.mxu0 %v359
        %v838 = vpop.f32.mrf.mxu0
        %v839 = vadd.f32 %v750, %v838
        %v840 = vpop.f32.mrf.mxu0
        %v841 = vadd.f32 %v752, %v840
        %842 = vmatmul.bf16.gmra.mxu0 %v361
        %v843 = vpop.f32.mrf.mxu0
        %v844 = vadd.f32 %v755, %v843
        %v845 = vpop.f32.mrf.mxu0
        %v846 = vadd.f32 %v757, %v845
        %847 = vmatmul.bf16.gmra.mxu0 %v363
        %v848 = vpop.f32.mrf.mxu0
        %v849 = vadd.f32 %v760, %v848
        %v850 = vpop.f32.mrf.mxu0
        %v851 = vadd.f32 %v762, %v850
        %852 = vmatmul.bf16.gmra.mxu0 %v365
        %v853 = vpop.f32.mrf.mxu0
        %v854 = vadd.f32 %v765, %v853
        %v855 = vpop.f32.mrf.mxu0
        %v856 = vadd.f32 %v767, %v855
        %857 = vmatmul.bf16.gmra.mxu0 %v367
        %v858 = vpop.f32.mrf.mxu0
        %v859 = vadd.f32 %v770, %v858
        %v860 = vpop.f32.mrf.mxu0
        %v861 = vadd.f32 %v772, %v860
        %862 = vmatmul.bf16.gmra.mxu0 %v369
        %v863 = vpop.f32.mrf.mxu0
        %v864 = vadd.f32 %v775, %v863
        %v865 = vpop.f32.mrf.mxu0
        %v866 = vadd.f32 %v777, %v865
        %867 = vmatmul.bf16.gmra.mxu0 %v371
        %v868 = vpop.f32.mrf.mxu0
        %v869 = vadd.f32 %v780, %v868
        %v870 = vpop.f32.mrf.mxu0
        %v871 = vadd.f32 %v782, %v870
        %872 = vmatmul.bf16.gmra.mxu0 %v373
        %v873 = vpop.f32.mrf.mxu0
        %v874 = vadd.f32 %v785, %v873
        %v875 = vpop.f32.mrf.mxu0
        %v876 = vadd.f32 %v787, %v875
        %877 = vmatmul.bf16.gmra.mxu0 %v375
        %v878 = vpop.f32.mrf.mxu0
        %v879 = vadd.f32 %v790, %v878
        %v880 = vpop.f32.mrf.mxu0
        %v881 = vadd.f32 %v792, %v880
        %882 = vmatmul.bf16.gmra.mxu0 %v377
        %v883 = vpop.f32.mrf.mxu0
        %v884 = vadd.f32 %v795, %v883
        %v885 = vpop.f32.mrf.mxu0
        %v886 = vadd.f32 %v797, %v885
        %887 = vmatmul.bf16.gmra.mxu0 %v379
        %v888 = vpop.f32.mrf.mxu0
        %v889 = vadd.f32 %v800, %v888
        %v890 = vpop.f32.mrf.mxu0
        %v891 = vadd.f32 %v802, %v890
        %892 = vmatmul.bf16.gmra.mxu0 %v381
        %v893 = vpop.f32.mrf.mxu0
        %v894 = vadd.f32 %v805, %v893
        %v895 = vpop.f32.mrf.mxu0
        %v896 = vadd.f32 %v807, %v895
        %897 = vmatmul.bf16.gmra.mxu0 %v383
        %v898 = vpop.f32.mrf.mxu0
        %v899 = vadd.f32 %v810, %v898
        %v900 = vpop.f32.mrf.mxu0
        %v901 = vadd.f32 %v812, %v900
        %902 = vmatmul.bf16.gmra.mxu0 %v385
        %v903 = vpop.f32.mrf.mxu0
        %v904 = vadd.f32 %v815, %v903
        %v905 = vpop.f32.mrf.mxu0
        %v906 = vadd.f32 %v817, %v905
        %907 = vdwg.mxu0
        %v908 = vmax.f32 %v651, 0.0
        %v909 = vmax.f32 %v829, 0.0
        %v910 = vmax.f32 %v653, 0.0
        %v911 = vmax.f32 %v831, 0.0
        %v912 = vmax.f32 %v656, 0.0
        %v913 = vmax.f32 %v834, 0.0
        %v914 = vmax.f32 %v658, 0.0
        %v915 = vmax.f32 %v836, 0.0
        %v916 = vmax.f32 %v661, 0.0
        %v917 = vmax.f32 %v839, 0.0
        %v918 = vmax.f32 %v663, 0.0
        %v919 = vmax.f32 %v841, 0.0
        %v920 = vmax.f32 %v666, 0.0
        %v921 = vmax.f32 %v844, 0.0
        %v922 = vmax.f32 %v668, 0.0
        %v923 = vmax.f32 %v846, 0.0
        %v924 = vmax.f32 %v671, 0.0
        %v925 = vmax.f32 %v849, 0.0
        %v926 = vmax.f32 %v673, 0.0
        %v927 = vmax.f32 %v851, 0.0
        %v928 = vmax.f32 %v676, 0.0
        %v929 = vmax.f32 %v854, 0.0
        %v930 = vmax.f32 %v678, 0.0
        %v931 = vmax.f32 %v856, 0.0
        %v932 = vmax.f32 %v681, 0.0
        %v933 = vmax.f32 %v859, 0.0
        %v934 = vmax.f32 %v683, 0.0
        %v935 = vmax.f32 %v861, 0.0
        %v936 = vmax.f32 %v686, 0.0
        %v937 = vmax.f32 %v864, 0.0
        %v938 = vmax.f32 %v688, 0.0
        %v939 = vmax.f32 %v866, 0.0
        %v940 = vmax.f32 %v691, 0.0
        %v941 = vmax.f32 %v869, 0.0
        %v942 = vmax.f32 %v693, 0.0
        %v943 = vmax.f32 %v871, 0.0
        %v944 = vmax.f32 %v696, 0.0
        %v945 = vmax.f32 %v874, 0.0
        %v946 = vmax.f32 %v698, 0.0
        %v947 = vmax.f32 %v876, 0.0
        %v948 = vmax.f32 %v701, 0.0
        %v949 = vmax.f32 %v879, 0.0
        %v950 = vmax.f32 %v703, 0.0
        %v951 = vmax.f32 %v881, 0.0
        %v952 = vmax.f32 %v706, 0.0
        %v953 = vmax.f32 %v884, 0.0
        %v954 = vmax.f32 %v708, 0.0
        %v955 = vmax.f32 %v886, 0.0
        %v956 = vmax.f32 %v711, 0.0
        %v957 = vmax.f32 %v889, 0.0
        %v958 = vmax.f32 %v713, 0.0
        %v959 = vmax.f32 %v891, 0.0
        %v960 = vmax.f32 %v716, 0.0
        %v961 = vmax.f32 %v894, 0.0
        %v962 = vmax.f32 %v718, 0.0
        %v963 = vmax.f32 %v896, 0.0
        %v964 = vmax.f32 %v721, 0.0
        %v965 = vmax.f32 %v899, 0.0
        %v966 = vmax.f32 %v723, 0.0
        %v967 = vmax.f32 %v901, 0.0
        %v968 = vmax.f32 %v726, 0.0
        %v969 = vmax.f32 %v904, 0.0
        %v970 = vmax.f32 %v728, 0.0
        %v971 = vmax.f32 %v906, 0.0
        %v972 = vadd.f32 %v908, %v258
        %v973 = vadd.f32 %v909, %v259
        %v974 = vadd.f32 %v910, %v260
        %v975 = vadd.f32 %v911, %v261
        %v976 = vadd.f32 %v912, %v262
        %v977 = vadd.f32 %v913, %v263
        %v978 = vadd.f32 %v914, %v264
        %v979 = vadd.f32 %v915, %v265
        %v980 = vadd.f32 %v916, %v266
        %v981 = vadd.f32 %v917, %v267
        %v982 = vadd.f32 %v918, %v268
        %v983 = vadd.f32 %v919, %v269
        %v984 = vadd.f32 %v920, %v270
        %v985 = vadd.f32 %v921, %v271
        %v986 = vadd.f32 %v922, %v272
        %v987 = vadd.f32 %v923, %v273
        %v988 = vadd.f32 %v924, %v274
        %v989 = vadd.f32 %v925, %v275
        %v990 = vadd.f32 %v926, %v276
        %v991 = vadd.f32 %v927, %v277
        %v992 = vadd.f32 %v928, %v278
        %v993 = vadd.f32 %v929, %v279
        %v994 = vadd.f32 %v930, %v280
        %v995 = vadd.f32 %v931, %v281
        %v996 = vadd.f32 %v932, %v282
        %v997 = vadd.f32 %v933, %v283
        %v998 = vadd.f32 %v934, %v284
        %v999 = vadd.f32 %v935, %v285
        %v1000 = vadd.f32 %v936, %v286
        %v1001 = vadd.f32 %v937, %v287
        %v1002 = vadd.f32 %v938, %v288
        %v1003 = vadd.f32 %v939, %v289
        %v1004 = vadd.f32 %v940, %v290
        %v1005 = vadd.f32 %v941, %v291
        %v1006 = vadd.f32 %v942, %v292
        %v1007 = vadd.f32 %v943, %v293
        %v1008 = vadd.f32 %v944, %v294
        %v1009 = vadd.f32 %v945, %v295
        %v1010 = vadd.f32 %v946, %v296
        %v1011 = vadd.f32 %v947, %v297
        %v1012 = vadd.f32 %v948, %v298
        %v1013 = vadd.f32 %v949, %v299
        %v1014 = vadd.f32 %v950, %v300
        %v1015 = vadd.f32 %v951, %v301
        %v1016 = vadd.f32 %v952, %v302
        %v1017 = vadd.f32 %v953, %v303
        %v1018 = vadd.f32 %v954, %v304
        %v1019 = vadd.f32 %v955, %v305
        %v1020 = vadd.f32 %v956, %v306
        %v1021 = vadd.f32 %v957, %v307
        %v1022 = vadd.f32 %v958, %v308
        %v1023 = vadd.f32 %v959, %v309
        %v1024 = vadd.f32 %v960, %v310
        %v1025 = vadd.f32 %v961, %v311
        %v1026 = vadd.f32 %v962, %v312
        %v1027 = vadd.f32 %v963, %v313
        %v1028 = vadd.f32 %v964, %v314
        %v1029 = vadd.f32 %v965, %v315
        %v1030 = vadd.f32 %v966, %v316
        %v1031 = vadd.f32 %v967, %v317
        %v1032 = vadd.f32 %v968, %v318
        %v1033 = vadd.f32 %v969, %v319
        %v1034 = vadd.f32 %v970, %v320
        %v1035 = vadd.f32 %v971, %v321
        %1036 = vst [vmem:[%s252] sm:$0xff] %v972
        %1037 = vst [vmem:[%s252 + $0x8] sm:$0xff] %v973
        %1038 = vst [vmem:[%s252 + $0x10] sm:$0xff] %v974
        %1039 = vst [vmem:[%s252 + $0x18] sm:$0xff] %v975
        %1040 = vst [vmem:[%s252 + $0x20] sm:$0xff] %v976
        %1041 = vst [vmem:[%s252 + $0x28] sm:$0xff] %v977
        %1042 = vst [vmem:[%s252 + $0x30] sm:$0xff] %v978
        %1043 = vst [vmem:[%s252 + $0x38] sm:$0xff] %v979
        %1044 = vst [vmem:[%s252 + $0x40] sm:$0xff] %v980
        %1045 = vst [vmem:[%s252 + $0x48] sm:$0xff] %v981
        %1046 = vst [vmem:[%s252 + $0x50] sm:$0xff] %v982
        %1047 = vst [vmem:[%s252 + $0x58] sm:$0xff] %v983
        %1048 = vst [vmem:[%s252 + $0x60] sm:$0xff] %v984
        %1049 = vst [vmem:[%s252 + $0x68] sm:$0xff] %v985
        %1050 = vst [vmem:[%s252 + $0x70] sm:$0xff] %v986
        %1051 = vst [vmem:[%s252 + $0x78] sm:$0xff] %v987
        %1052 = vst [vmem:[%s252 + $0x80] sm:$0xff] %v988
        %1053 = vst [vmem:[%s252 + $0x88] sm:$0xff] %v989
        %1054 = vst [vmem:[%s252 + $0x90] sm:$0xff] %v990
        %1055 = vst [vmem:[%s252 + $0x98] sm:$0xff] %v991
        %1056 = vst [vmem:[%s252 + $0xa0] sm:$0xff] %v992
        %1057 = vst [vmem:[%s252 + $0xa8] sm:$0xff] %v993
        %1058 = vst [vmem:[%s252 + $0xb0] sm:$0xff] %v994
        %1059 = vst [vmem:[%s252 + $0xb8] sm:$0xff] %v995
        %1060 = vst [vmem:[%s252 + $0xc0] sm:$0xff] %v996
        %1061 = vst [vmem:[%s252 + $0xc8] sm:$0xff] %v997
        %1062 = vst [vmem:[%s252 + $0xd0] sm:$0xff] %v998
        %1063 = vst [vmem:[%s252 + $0xd8] sm:$0xff] %v999
        %1064 = vst [vmem:[%s252 + $0xe0] sm:$0xff] %v1000
        %1065 = vst [vmem:[%s252 + $0xe8] sm:$0xff] %v1001
        %1066 = vst [vmem:[%s252 + $0xf0] sm:$0xff] %v1002
        %1067 = vst [vmem:[%s252 + $0xf8] sm:$0xff] %v1003
        %1068 = vst [vmem:[%s252 + $0x100] sm:$0xff] %v1004
        %1069 = vst [vmem:[%s252 + $0x108] sm:$0xff] %v1005
        %1070 = vst [vmem:[%s252 + $0x110] sm:$0xff] %v1006
        %1071 = vst [vmem:[%s252 + $0x118] sm:$0xff] %v1007
        %1072 = vst [vmem:[%s252 + $0x120] sm:$0xff] %v1008
        %1073 = vst [vmem:[%s252 + $0x128] sm:$0xff] %v1009
        %1074 = vst [vmem:[%s252 + $0x130] sm:$0xff] %v1010
        %1075 = vst [vmem:[%s252 + $0x138] sm:$0xff] %v1011
        %1076 = vst [vmem:[%s252 + $0x140] sm:$0xff] %v1012
        %1077 = vst [vmem:[%s252 + $0x148] sm:$0xff] %v1013
        %1078 = vst [vmem:[%s252 + $0x150] sm:$0xff] %v1014
        %1079 = vst [vmem:[%s252 + $0x158] sm:$0xff] %v1015
        %1080 = vst [vmem:[%s252 + $0x160] sm:$0xff] %v1016
        %1081 = vst [vmem:[%s252 + $0x168] sm:$0xff] %v1017
        %1082 = vst [vmem:[%s252 + $0x170] sm:$0xff] %v1018
        %1083 = vst [vmem:[%s252 + $0x178] sm:$0xff] %v1019
        %1084 = vst [vmem:[%s252 + $0x180] sm:$0xff] %v1020
        %1085 = vst [vmem:[%s252 + $0x188] sm:$0xff] %v1021
        %1086 = vst [vmem:[%s252 + $0x190] sm:$0xff] %v1022
        %1087 = vst [vmem:[%s252 + $0x198] sm:$0xff] %v1023
        %1088 = vst [vmem:[%s252 + $0x1a0] sm:$0xff] %v1024
        %1089 = vst [vmem:[%s252 + $0x1a8] sm:$0xff] %v1025
        %1090 = vst [vmem:[%s252 + $0x1b0] sm:$0xff] %v1026
        %1091 = vst [vmem:[%s252 + $0x1b8] sm:$0xff] %v1027
        %1092 = vst [vmem:[%s252 + $0x1c0] sm:$0xff] %v1028
        %1093 = vst [vmem:[%s252 + $0x1c8] sm:$0xff] %v1029
        %1094 = vst [vmem:[%s252 + $0x1d0] sm:$0xff] %v1030
        %1095 = vst [vmem:[%s252 + $0x1d8] sm:$0xff] %v1031
        %1096 = vst [vmem:[%s252 + $0x1e0] sm:$0xff] %v1032
        %1097 = vst [vmem:[%s252 + $0x1e8] sm:$0xff] %v1033
        %1098 = vst [vmem:[%s252 + $0x1f0] sm:$0xff] %v1034
        %1099 = vst [vmem:[%s252 + $0x1f8] sm:$0xff] %v1035
        %s1100 = sand.u32 %s121, 1
        %s1101 = scalar_lea.sflag [#allocation4], %s1100
        %s1102 = sand.u32 %s121, 1
        %s1103 = smul.addr %s1102, 512
        %s1104 = scalar_lea.vmem [#allocation8], %s1103
        // Predicated region
        $region45: #{tpu_custom_call.1} parent=31 // pred_check
          %p1105 = pneg %p131
        $region46: #{tpu_custom_call.1} parent=31 // pred_check_branch
          %1107 = sbr.rel (%p1105) target = $region48
        $region47: #{tpu_custom_call.1} parent=31 // pred_region
          %s1108 = smul.u32 32, %s25
          %s1109 = smul.u32 2, %s26
          %1111 = vsyncadd %s1101, 0
          %s1112 = smul.addr %s1108, 2
          %s1113 = sadd.s32 %s1109, %s1112
          %s1114 = smul.addr %s1113, 8
          %s1115 = scalar_lea.hbm %s3, %s1114
          %s1116 = sshll.u32 %s1104, 4
          %s1117 = int_to_ptr.vmem [resolvable:$true] %s1116
          %s1118 = sshll.u32 %s1115, 4
          %s1119 = int_to_ptr.hbm [resolvable:$true] %s1118
          %1124 = dma.vmem_to_hbm [thread:$0]  %s1117, 8192, %s1119, %s1101, 256, 256, 16
        $region48: #{tpu_custom_call.1} parent=31 // pred_fallthru
          _
      $region32: #{tpu_custom_call.1} parent=5 // pred_fallthru
        _
      %p1125 = scmp.le.s32.totalorder 2, %s16
      // Predicated region
      $region49: #{tpu_custom_call.1} parent=5 // pred_check
        %p1126 = pneg %p1125
      $region50: #{tpu_custom_call.1} parent=5 // pred_check_branch
        %1128 = sbr.rel (%p1126) target = $region52
      $region51: #{tpu_custom_call.1} parent=5 // pred_region
        %s1129 = ssub.s32 %s16, 2
        // Predicated region
        $region53: #{tpu_custom_call.1} parent=51 // pred_check
          %p1130 = pneg %p137
        $region54: #{tpu_custom_call.1} parent=51 // pred_check_branch
          %1132 = sbr.rel (%p1130) target = $region56
        $region55: #{tpu_custom_call.1} parent=51 // pred_region
          %s1133 = sand.u32 %s122, 1
          %s1134 = scalar_lea.sflag [#allocation4], %s1133
          %s1135 = sand.u32 %s122, 1
          %s1136 = smul.addr %s1135, 512
          %s1137 = scalar_lea.vmem [#allocation8], %s1136
          %1139 = dma.done %s1134, 8192
        $region56: #{tpu_custom_call.1} parent=51 // pred_fallthru
          _
      $region52: #{tpu_custom_call.1} parent=5 // pred_fallthru
        _
    $region6: #{tpu_custom_call.1} parent=1 // loop_footer
      %s20 = sadd.s32 1, %s16
    $region7: #{tpu_custom_call.1} parent=1 // loop_footer_branch
      %15 = sbr.rel target = $region3
    $region8: #{tpu_custom_call.1} parent=1 // loop_exit
      _
    %1140 = vsyncpa [#allocation3], 1
    %s1141 = scalar_lea.sflag [#allocation3], 1
    %1142 = vsyncpa %s1141, 1
    %1143 = vsyncpa [#allocation6], 1
    %1144 = vsyncpa [#allocation4], 1
    %s1145 = scalar_lea.sflag [#allocation4], 1
    %1146 = vsyncpa %s1145, 1

</llo_original>
